<compile_context>
chip_gen: v7x
topology: tpu7x:2x2x1
jax: 0.10.0
libtpu: 0.0.40
codegen_flags: <defaults>
</compile_context>

<pallas_src>
import functools
import math

import jax
import jax.numpy as jnp
from jax import lax
from jax.experimental import pallas as pl
from jax.experimental.pallas import tpu as pltpu

LN_EPS = 1e-5              # nn.LayerNorm default eps
LEAKY_SLOPE = 0.01         # nn.LeakyReLU default negative_slope


def _vmem_limit_bytes():
    """Generation-aware scoped-VMEM budget: ~75% of physical VMEM.
    v5e/v6e (128 MiB) -> 96 MiB, v7x (64 MiB per core) -> 48 MiB."""
    phys = 64 * 1024 * 1024                       # conservative default (v7x)
    try:
        cap = getattr(pltpu.get_tpu_info(), "vmem_capacity_bytes", None)
        if cap:
            phys = int(cap)
    except Exception:
        pass
    return (phys * 3) // 4


def _fold_and_pad(seq_len, channels):
    """Fold f consecutive sequence rows into the lane axis so the last dim is a
    multiple of 128.  Returns (f, padded_seq_len).  Pads (with zeros) when
    seq_len % f != 0 and the overhead is small; otherwise falls back to f=1."""
    if channels % 128 == 0:
        return 1, seq_len
    f = 128 // math.gcd(channels, 128)
    lpad = ((seq_len + f - 1) // f) * f
    if lpad == seq_len or (lpad - seq_len) <= seq_len // 8:
        return f, lpad
    return 1, seq_len          # pathological padding -> lane-sparse fallback


def _choose_rows(total_rows, row_bytes, budget_bytes):
    """(Folded) sequence rows per tile: fill ~budget_bytes, multiple of 8
    (or the full extent).  Bigger tiles amortize the ~0.35us per-step cost."""
    rows = max(int(budget_bytes // max(row_bytes, 1)), 1)
    if rows >= total_rows:
        return total_rows
    return max((rows // 8) * 8, 8)


# ---------------------------------------------------------------------------
# Pass 1: sequence mean (tiled, accumulated) + gate MLP (batched per group)
# ---------------------------------------------------------------------------
def _gate_kernel(x_ref, w1_ref, b1_ref, g_ref, be_ref, w2_ref, b2_ref,
                 gate_ref, acc_ref, *, layer_num, seq_len, fold, rows_last):
    li = pl.program_id(1)
    n_l = pl.num_programs(1)
    tl = x_ref.shape[1]

    @pl.when(li == 0)
    def _():
        acc_ref[...] = jnp.zeros_like(acc_ref)

    def _accum(n_valid):
        # n_valid is static; for a ragged final tile this drops the
        # out-of-bounds (garbage) rows of the block with a static slice —
        # no iota/compare/select in the hot loop.
        xv = x_ref[...][:, :n_valid, :].astype(jnp.float32)
        acc_ref[...] += jnp.sum(xv, axis=1)                  # (bg, fold*C)

    if rows_last == tl:
        # All tiles are full: single unmasked fast path.
        _accum(tl)
    else:
        @pl.when(li < n_l - 1)
        def _():
            _accum(tl)

    @pl.when(li == n_l - 1)
    def _():
        if rows_last != tl:
            _accum(rows_last)                                # ragged last tile

        cf = acc_ref.shape[-1]
        c = cf // fold
        # Un-fold the lane-packed accumulator back to (bg, C); take the mean.
        s = acc_ref[:, 0:c]
        for j in range(1, fold):
            s = s + acc_ref[:, j * c:(j + 1) * c]
        y = s * (1.0 / seq_len)                              # (bg, C), f32

        for i in range(layer_num):                           # static unrolled
            # Linear(in_channels -> in_channels // reduction), batched over bg.
            h = jnp.dot(y, w1_ref[i], preferred_element_type=jnp.float32) + b1_ref[i]
            # LayerNorm over the hidden dim (biased variance, like PyTorch).
            mu = jnp.mean(h, axis=-1, keepdims=True)
            var = jnp.mean((h - mu) ** 2, axis=-1, keepdims=True)
            h = (h - mu) * lax.rsqrt(var + LN_EPS) * g_ref[i] + be_ref[i]
            # nn.Dropout(p=0.1): identity in eval/inference mode.
            # TODO(synk): training-mode dropout (stateful PRNG mask) not implemented.
            h = jnp.maximum(h, 0.0)                          # ReLU
            # Linear(in_channels // reduction -> in_channels)
            y = jnp.dot(h, w2_ref[i], preferred_element_type=jnp.float32) + b2_ref[i]
            y = jnp.where(y > 0, y, LEAKY_SLOPE * y)         # LeakyReLU

        # Emit the gate already folded (f-way lane replication) so pass 2 can
        # consume it directly — no host-side tile / extra HBM round trip.
        if fold > 1:
            y = jnp.concatenate([y] * fold, axis=-1)         # (bg, fold*C)
        gate_ref[...] = y[None, :, :].astype(gate_ref.dtype)


# ---------------------------------------------------------------------------
# Pass 2: lane-dense, tiled broadcast multiply  out = x * gate
# ---------------------------------------------------------------------------
def _mul_kernel(x_ref, gate_ref, o_ref):
    o_ref[...] = (x_ref[...] * gate_ref[...]).astype(o_ref.dtype)


def times_channel_squeeze(x, params, *, layer_num):
    B, L, C = x.shape
    H = params["w1"].shape[-1]
    itemsize = x.dtype.itemsize

    vmem_limit = _vmem_limit_bytes()

    # Lane-dense fold: pack f consecutive sequence rows into the lane axis so
    # both kernels see a last dim that is a multiple of 128.  Zero-pad L to a
    # fold multiple when needed (zeros don't perturb the mean; padded output
    # rows are sliced away below).
    f, Lpad = _fold_and_pad(L, C)
    if Lpad != L:
        x = jnp.pad(x, ((0, 0), (0, Lpad - L), (0, 0)))
    Lf, Cf = Lpad // f, C * f
    xf = x.reshape(B, Lf, Cf)

    # ---------------- Pass 1: gate = MLP(mean_over_seq(x)) ----------------
    # Split the batch into (up to) two groups -> leading "parallel" grid axis
    # feeds both v7x TensorCores; on single-TC v5e/v6e it's a harmless loop.
    n_bg = 2 if (B >= 2 and B % 2 == 0) else 1
    bg = B // n_bg

    budget_g = vmem_limit // 3          # ~2 double-buffered x tiles + params
    tl_g = _choose_rows(Lf, bg * Cf * itemsize, budget_g)
    n_gl = pl.cdiv(Lf, tl_g)
    rows_last = Lf - (n_gl - 1) * tl_g  # valid rows in the final tile (static)

    def _const3(shape):
        return pl.BlockSpec(shape, lambda g, l: (0, 0, 0))

    gate = pl.pallas_call(
        functools.partial(_gate_kernel, layer_num=layer_num, seq_len=L,
                          fold=f, rows_last=rows_last),
        out_shape=jax.ShapeDtypeStruct((n_bg, bg, Cf), jnp.float32),
        grid=(n_bg, n_gl),
        in_specs=[
            pl.BlockSpec((bg, tl_g, Cf), lambda g, l: (g, l, 0)),   # x (folded)
            _const3((layer_num, C, H)),                             # w1
            _const3((layer_num, 1, H)),                             # b1
            _const3((layer_num, 1, H)),                             # LayerNorm gamma
            _const3((layer_num, 1, H)),                             # LayerNorm beta
            _const3((layer_num, H, C)),                             # w2
            _const3((layer_num, 1, C)),                             # b2
        ],
        out_specs=pl.BlockSpec((1, bg, Cf), lambda g, l: (g, 0, 0)),
        scratch_shapes=[pltpu.VMEM((bg, Cf), jnp.float32)],
        compiler_params=pltpu.CompilerParams(
            dimension_semantics=("parallel", "arbitrary"),
            vmem_limit_bytes=vmem_limit),
        cost_estimate=pl.CostEstimate(
            flops=B * Lpad * C + 4 * B * layer_num * C * H,
            transcendentals=0,
            bytes_accessed=B * Lpad * C * itemsize + B * Cf * 4),
    )(xf, params["w1"], params["b1"], params["gamma"], params["beta"],
      params["w2"], params["b2"])

    # Tiny metadata reshape: (n_bg, bg, Cf) -> (B, 1, Cf), already folded.
    gate_f = gate.reshape(B, 1, Cf)

    # ---------------- Pass 2: out = x * gate (broadcast over seq) ----------
    # Carries 2/3 of the HBM traffic (read x + write out): big lane-dense
    # tiles, fully parallel grid.
    # NOTE: for very large B with small Lf, flattening to (B*Lf, Cf) row tiles
    # would amortize the per-step cost further; not needed at these shapes.
    budget_m = vmem_limit // 6          # 2 x-tiles + 2 out-tiles live
    tl = _choose_rows(Lf, Cf * itemsize, budget_m)
    n_l = pl.cdiv(Lf, tl)

    out_f = pl.pallas_call(
        _mul_kernel,
        out_shape=jax.ShapeDtypeStruct((B, Lf, Cf), x.dtype),
        grid=(B, n_l),
        in_specs=[
            pl.BlockSpec((1, tl, Cf), lambda b, l: (b, l, 0)),  # x tile
            pl.BlockSpec((1, 1, Cf), lambda b, l: (b, 0, 0)),   # gate row (folded)
        ],
        out_specs=pl.BlockSpec((1, tl, Cf), lambda b, l: (b, l, 0)),
        compiler_params=pltpu.CompilerParams(
            dimension_semantics=("parallel", "parallel"),
            vmem_limit_bytes=vmem_limit),
        cost_estimate=pl.CostEstimate(
            flops=B * Lpad * C,
            transcendentals=0,
            bytes_accessed=2 * B * Lpad * C * itemsize + B * Cf * 4),
    )(xf, gate_f)

    out = out_f.reshape(B, Lpad, C)
    if Lpad != L:
        out = out[:, :L, :]
    return out


# ---------------------------------------------------------------------------
# Pure-JAX reference + deterministic init (PyTorch parameter shapes, weights
# stored as (in, out), i.e. already transposed).
# ---------------------------------------------------------------------------
def ref_forward(x, params, layer_num):
    y = jnp.mean(x, axis=1)                                 # (B, C)
    for i in range(layer_num):
        h = y @ params["w1"][i] + params["b1"][i, 0]
        mu = h.mean(-1, keepdims=True)
        var = ((h - mu) ** 2).mean(-1, keepdims=True)
        h = (h - mu) / jnp.sqrt(var + LN_EPS) * params["gamma"][i, 0] + params["beta"][i, 0]
        h = jnp.maximum(h, 0.0)
        y = h @ params["w2"][i] + params["b2"][i, 0]
        y = jnp.where(y > 0, y, LEAKY_SLOPE * y)
    return x * y[:, None, :]


def init_params(key, in_channels, reduction, layer_num):
    H = in_channels // reduction
    k1, k2, k3, k4 = jax.random.split(key, 4)
    bound1 = 1.0 / (in_channels ** 0.5)
    bound2 = 1.0 / (H ** 0.5)
    return {
        "w1": jax.random.uniform(k1, (layer_num, in_channels, H),
                                 minval=-bound1, maxval=bound1, dtype=jnp.float32),
        "b1": jax.random.uniform(k2, (layer_num, 1, H),
                                 minval=-bound1, maxval=bound1, dtype=jnp.float32),
        "gamma": jnp.ones((layer_num, 1, H), jnp.float32),
        "beta": jnp.zeros((layer_num, 1, H), jnp.float32),
        "w2": jax.random.uniform(k3, (layer_num, H, in_channels),
                                 minval=-bound2, maxval=bound2, dtype=jnp.float32),
        "b2": jax.random.uniform(k4, (layer_num, 1, in_channels),
                                 minval=-bound2, maxval=bound2, dtype=jnp.float32),
    }


if __name__ == "__main__":
    # Small shapes implied by the forward: x is (batch, seq_len, in_channels).
    B, L, C = 2, 8, 64
    reduction = 16                 # module default -> hidden = 4
    layer_num = 2

    key = jax.random.PRNGKey(0)
    kx, kp = jax.random.split(key)
    x = jax.random.normal(kx, (B, L, C), dtype=jnp.float32)
    params = init_params(kp, C, reduction, layer_num)

    out = times_channel_squeeze(x, params, layer_num=layer_num)
    out = jax.block_until_ready(out)

    ref = ref_forward(x, params, layer_num)
    assert out.shape == (B, L, C)
    assert jnp.allclose(out, ref, atol=1e-5, rtol=1e-5), "mismatch vs reference"

    print("KERNEL_OK")
</pallas_src>

<mosaic_0001>
module attributes {stable_mosaic.version = 11 : i64} {
  func.func @_gate_kernel(%arg0: i32, %arg1: i32, %arg2: memref<1x4x128xf32, #tpu.memory_space<vmem>>, %arg3: memref<2x64x4xf32, #tpu.memory_space<vmem>>, %arg4: memref<2x1x4xf32, #tpu.memory_space<vmem>>, %arg5: memref<2x1x4xf32, #tpu.memory_space<vmem>>, %arg6: memref<2x1x4xf32, #tpu.memory_space<vmem>>, %arg7: memref<2x4x64xf32, #tpu.memory_space<vmem>>, %arg8: memref<2x1x64xf32, #tpu.memory_space<vmem>>, %arg9: memref<1x1x128xf32, #tpu.memory_space<vmem>>, %arg10: memref<1x128xf32, #tpu.memory_space<vmem>>) attributes {dimension_semantics = [#tpu.dimension_semantics<parallel>, #tpu.dimension_semantics<arbitrary>], iteration_bounds = array<i64: 2, 1>, scalar_prefetch = 0 : i64, scratch_operands = 1 : i64, tpu.core_type = #tpu.core_type<tc>, window_params = [{transform_indices = @transform_0, window_bounds = array<i64: 1, 4, 128>}, {pipeline_mode = #tpu.pipeline_mode<synchronous>, transform_indices = @transform_1, window_bounds = array<i64: 2, 64, 4>}, {pipeline_mode = #tpu.pipeline_mode<synchronous>, transform_indices = @transform_2, window_bounds = array<i64: 2, 1, 4>}, {pipeline_mode = #tpu.pipeline_mode<synchronous>, transform_indices = @transform_3, window_bounds = array<i64: 2, 1, 4>}, {pipeline_mode = #tpu.pipeline_mode<synchronous>, transform_indices = @transform_4, window_bounds = array<i64: 2, 1, 4>}, {pipeline_mode = #tpu.pipeline_mode<synchronous>, transform_indices = @transform_5, window_bounds = array<i64: 2, 4, 64>}, {pipeline_mode = #tpu.pipeline_mode<synchronous>, transform_indices = @transform_6, window_bounds = array<i64: 2, 1, 64>}, {transform_indices = @transform_7, window_bounds = array<i64: 1, 1, 128>}]} {
    %c0_i32 = arith.constant 0 : i32
    %0 = arith.cmpi eq, %arg1, %c0_i32 : i32
    %1 = arith.extui %0 : i1 to i32
    %c0_i32_0 = arith.constant 0 : i32
    %2 = arith.cmpi ne, %1, %c0_i32_0 : i32
    scf.if %2 {
      %cst_9 = arith.constant 0.000000e+00 : f32
      %11 = vector.broadcast %cst_9 : f32 to vector<1x128xf32>
      %c0_10 = arith.constant 0 : index
      %c0_11 = arith.constant 0 : index
      %12 = vector.load %arg10[%c0_10, %c0_11] : memref<1x128xf32, #tpu.memory_space<vmem>>, vector<1x128xf32>
      tpu.vector_store %arg10[%c0_10, %c0_11], %11 {strides = array<i32>} : memref<1x128xf32, #tpu.memory_space<vmem>>, vector<1x128xf32>,
    } else {
    }
    %c0 = arith.constant 0 : index
    %c0_1 = arith.constant 0 : index
    %c0_2 = arith.constant 0 : index
    %3 = vector.load %arg2[%c0, %c0_1, %c0_2] : memref<1x4x128xf32, #tpu.memory_space<vmem>>, vector<1x4x128xf32>
    %c0_3 = arith.constant 0 : index
    %c0_4 = arith.constant 0 : index
    %4 = vector.load %arg10[%c0_3, %c0_4] : memref<1x128xf32, #tpu.memory_space<vmem>>, vector<1x128xf32>
    %cst = arith.constant dense<0.000000e+00> : vector<1x128xf32>
    %5 = vector.multi_reduction <add>, %3, %cst [1] : vector<1x4x128xf32> to vector<1x128xf32>
    %6 = arith.addf %4, %5 : vector<1x128xf32>
    %c0_5 = arith.constant 0 : index
    %c0_6 = arith.constant 0 : index
    %7 = vector.load %arg10[%c0_5, %c0_6] : memref<1x128xf32, #tpu.memory_space<vmem>>, vector<1x128xf32>
    tpu.vector_store %arg10[%c0_5, %c0_6], %6 {strides = array<i32>} : memref<1x128xf32, #tpu.memory_space<vmem>>, vector<1x128xf32>,
    %c0_i32_7 = arith.constant 0 : i32
    %8 = arith.cmpi eq, %arg1, %c0_i32_7 : i32
    %9 = arith.extui %8 : i1 to i32
    %c0_i32_8 = arith.constant 0 : i32
    %10 = arith.cmpi ne, %9, %c0_i32_8 : i32
    scf.if %10 {
      %c0_9 = arith.constant 0 : index
      %c0_10 = arith.constant 0 : index
      %11 = vector.load %arg10[%c0_9, %c0_10] : memref<1x128xf32, #tpu.memory_space<vmem>>, vector<1x64xf32>
      %c0_11 = arith.constant 0 : index
      %c64 = arith.constant 64 : index
      %12 = vector.load %arg10[%c0_11, %c64] : memref<1x128xf32, #tpu.memory_space<vmem>>, vector<1x64xf32>
      %13 = arith.addf %11, %12 : vector<1x64xf32>
      %cst_12 = arith.constant 1.250000e-01 : f32
      %14 = vector.broadcast %cst_12 : f32 to vector<1x64xf32>
      %15 = arith.mulf %13, %14 : vector<1x64xf32>
      %c0_13 = arith.constant 0 : index
      %c0_14 = arith.constant 0 : index
      %c0_15 = arith.constant 0 : index
      %16 = vector.load %arg3[%c0_13, %c0_14, %c0_15] : memref<2x64x4xf32, #tpu.memory_space<vmem>>, vector<1x64x4xf32>
      %17 = vector.shape_cast %16 : vector<1x64x4xf32> to vector<64x4xf32>
      %cst_16 = arith.constant dense<0.000000e+00> : vector<1x4xf32>
      %18 = tpu.matmul %15, %17, %cst_16 {dimension_numbers = #tpu.dot_dimension_numbers<[1], [0], [0], [1], [0, 0, 1, 1], [], []>} : vector<1x64xf32>, vector<64x4xf32>, vector<1x4xf32> -> vector<1x4xf32>
      %c0_17 = arith.constant 0 : index
      %c0_18 = arith.constant 0 : index
      %c0_19 = arith.constant 0 : index
      %19 = vector.load %arg4[%c0_17, %c0_18, %c0_19] : memref<2x1x4xf32, #tpu.memory_space<vmem>>, vector<1x1x4xf32>
      %20 = vector.shape_cast %19 : vector<1x1x4xf32> to vector<1x4xf32>
      %21 = arith.addf %18, %20 : vector<1x4xf32>
      %cst_20 = arith.constant dense<0.000000e+00> : vector<1xf32>
      %22 = vector.multi_reduction <add>, %21, %cst_20 [1] : vector<1x4xf32> to vector<1xf32>
      %23 = vector.shape_cast %22 : vector<1xf32> to vector<1x1xf32>
      %cst_21 = arith.constant 4.000000e+00 : f32
      %24 = vector.broadcast %cst_21 : f32 to vector<1x1xf32>
      %25 = arith.divf %23, %24 : vector<1x1xf32>
      %26 = vector.broadcast %25 : vector<1x1xf32> to vector<1x4xf32>
      %27 = arith.subf %21, %26 : vector<1x4xf32>
      %28 = arith.mulf %27, %27 : vector<1x4xf32>
      %cst_22 = arith.constant dense<0.000000e+00> : vector<1xf32>
      %29 = vector.multi_reduction <add>, %28, %cst_22 [1] : vector<1x4xf32> to vector<1xf32>
      %30 = vector.shape_cast %29 : vector<1xf32> to vector<1x1xf32>
      %cst_23 = arith.constant 4.000000e+00 : f32
      %31 = vector.broadcast %cst_23 : f32 to vector<1x1xf32>
      %32 = arith.divf %30, %31 : vector<1x1xf32>
      %33 = vector.broadcast %25 : vector<1x1xf32> to vector<1x4xf32>
      %34 = arith.subf %21, %33 : vector<1x4xf32>
      %cst_24 = arith.constant 9.99999974E-6 : f32
      %35 = vector.broadcast %cst_24 : f32 to vector<1x1xf32>
      %36 = arith.addf %32, %35 : vector<1x1xf32>
      %37 = math.rsqrt %36 : vector<1x1xf32>
      %38 = vector.broadcast %37 : vector<1x1xf32> to vector<1x4xf32>
      %39 = arith.mulf %34, %38 : vector<1x4xf32>
      %c0_25 = arith.constant 0 : index
      %c0_26 = arith.constant 0 : index
      %c0_27 = arith.constant 0 : index
      %40 = vector.load %arg5[%c0_25, %c0_26, %c0_27] : memref<2x1x4xf32, #tpu.memory_space<vmem>>, vector<1x1x4xf32>
      %41 = vector.shape_cast %40 : vector<1x1x4xf32> to vector<1x4xf32>
      %42 = arith.mulf %39, %41 : vector<1x4xf32>
      %c0_28 = arith.constant 0 : index
      %c0_29 = arith.constant 0 : index
      %c0_30 = arith.constant 0 : index
      %43 = vector.load %arg6[%c0_28, %c0_29, %c0_30] : memref<2x1x4xf32, #tpu.memory_space<vmem>>, vector<1x1x4xf32>
      %44 = vector.shape_cast %43 : vector<1x1x4xf32> to vector<1x4xf32>
      %45 = arith.addf %42, %44 : vector<1x4xf32>
      %cst_31 = arith.constant 0.000000e+00 : f32
      %46 = vector.broadcast %cst_31 : f32 to vector<1x4xf32>
      %47 = arith.maximumf %45, %46 : vector<1x4xf32>
      %c0_32 = arith.constant 0 : index
      %c0_33 = arith.constant 0 : index
      %c0_34 = arith.constant 0 : index
      %48 = vector.load %arg7[%c0_32, %c0_33, %c0_34] : memref<2x4x64xf32, #tpu.memory_space<vmem>>, vector<1x4x64xf32>
      %49 = vector.shape_cast %48 : vector<1x4x64xf32> to vector<4x64xf32>
      %cst_35 = arith.constant dense<0.000000e+00> : vector<1x64xf32>
      %50 = tpu.matmul %47, %49, %cst_35 {dimension_numbers = #tpu.dot_dimension_numbers<[1], [0], [0], [1], [0, 0, 1, 1], [], []>} : vector<1x4xf32>, vector<4x64xf32>, vector<1x64xf32> -> vector<1x64xf32>
      %c0_36 = arith.constant 0 : index
      %c0_37 = arith.constant 0 : index
      %c0_38 = arith.constant 0 : index
      %51 = vector.load %arg8[%c0_36, %c0_37, %c0_38] : memref<2x1x64xf32, #tpu.memory_space<vmem>>, vector<1x1x64xf32>
      %52 = vector.shape_cast %51 : vector<1x1x64xf32> to vector<1x64xf32>
      %53 = arith.addf %50, %52 : vector<1x64xf32>
      %cst_39 = arith.constant 0.000000e+00 : f32
      %54 = vector.broadcast %cst_39 : f32 to vector<1x64xf32>
      %55 = arith.cmpf ogt, %53, %54 : vector<1x64xf32>
      %cst_40 = arith.constant 0.00999999977 : f32
      %56 = vector.broadcast %cst_40 : f32 to vector<1x64xf32>
      %57 = arith.mulf %56, %53 : vector<1x64xf32>
      %58 = arith.select %55, %53, %57 : vector<1x64xi1>, vector<1x64xf32>
      %c1 = arith.constant 1 : index
      %c0_41 = arith.constant 0 : index
      %c0_42 = arith.constant 0 : index
      %59 = vector.load %arg3[%c1, %c0_41, %c0_42] : memref<2x64x4xf32, #tpu.memory_space<vmem>>, vector<1x64x4xf32>
      %60 = vector.shape_cast %59 : vector<1x64x4xf32> to vector<64x4xf32>
      %cst_43 = arith.constant dense<0.000000e+00> : vector<1x4xf32>
      %61 = tpu.matmul %58, %60, %cst_43 {dimension_numbers = #tpu.dot_dimension_numbers<[1], [0], [0], [1], [0, 0, 1, 1], [], []>} : vector<1x64xf32>, vector<64x4xf32>, vector<1x4xf32> -> vector<1x4xf32>
      %c1_44 = arith.constant 1 : index
      %c0_45 = arith.constant 0 : index
      %c0_46 = arith.constant 0 : index
      %62 = vector.load %arg4[%c1_44, %c0_45, %c0_46] : memref<2x1x4xf32, #tpu.memory_space<vmem>>, vector<1x1x4xf32>
      %63 = vector.shape_cast %62 : vector<1x1x4xf32> to vector<1x4xf32>
      %64 = arith.addf %61, %63 : vector<1x4xf32>
      %cst_47 = arith.constant dense<0.000000e+00> : vector<1xf32>
      %65 = vector.multi_reduction <add>, %64, %cst_47 [1] : vector<1x4xf32> to vector<1xf32>
      %66 = vector.shape_cast %65 : vector<1xf32> to vector<1x1xf32>
      %cst_48 = arith.constant 4.000000e+00 : f32
      %67 = vector.broadcast %cst_48 : f32 to vector<1x1xf32>
      %68 = arith.divf %66, %67 : vector<1x1xf32>
      %69 = vector.broadcast %68 : vector<1x1xf32> to vector<1x4xf32>
      %70 = arith.subf %64, %69 : vector<1x4xf32>
      %71 = arith.mulf %70, %70 : vector<1x4xf32>
      %cst_49 = arith.constant dense<0.000000e+00> : vector<1xf32>
      %72 = vector.multi_reduction <add>, %71, %cst_49 [1] : vector<1x4xf32> to vector<1xf32>
      %73 = vector.shape_cast %72 : vector<1xf32> to vector<1x1xf32>
      %cst_50 = arith.constant 4.000000e+00 : f32
      %74 = vector.broadcast %cst_50 : f32 to vector<1x1xf32>
      %75 = arith.divf %73, %74 : vector<1x1xf32>
      %76 = vector.broadcast %68 : vector<1x1xf32> to vector<1x4xf32>
      %77 = arith.subf %64, %76 : vector<1x4xf32>
      %cst_51 = arith.constant 9.99999974E-6 : f32
      %78 = vector.broadcast %cst_51 : f32 to vector<1x1xf32>
      %79 = arith.addf %75, %78 : vector<1x1xf32>
      %80 = math.rsqrt %79 : vector<1x1xf32>
      %81 = vector.broadcast %80 : vector<1x1xf32> to vector<1x4xf32>
      %82 = arith.mulf %77, %81 : vector<1x4xf32>
      %c1_52 = arith.constant 1 : index
      %c0_53 = arith.constant 0 : index
      %c0_54 = arith.constant 0 : index
      %83 = vector.load %arg5[%c1_52, %c0_53, %c0_54] : memref<2x1x4xf32, #tpu.memory_space<vmem>>, vector<1x1x4xf32>
      %84 = vector.shape_cast %83 : vector<1x1x4xf32> to vector<1x4xf32>
      %85 = arith.mulf %82, %84 : vector<1x4xf32>
      %c1_55 = arith.constant 1 : index
      %c0_56 = arith.constant 0 : index
      %c0_57 = arith.constant 0 : index
      %86 = vector.load %arg6[%c1_55, %c0_56, %c0_57] : memref<2x1x4xf32, #tpu.memory_space<vmem>>, vector<1x1x4xf32>
      %87 = vector.shape_cast %86 : vector<1x1x4xf32> to vector<1x4xf32>
      %88 = arith.addf %85, %87 : vector<1x4xf32>
      %cst_58 = arith.constant 0.000000e+00 : f32
      %89 = vector.broadcast %cst_58 : f32 to vector<1x4xf32>
      %90 = arith.maximumf %88, %89 : vector<1x4xf32>
      %c1_59 = arith.constant 1 : index
      %c0_60 = arith.constant 0 : index
      %c0_61 = arith.constant 0 : index
      %91 = vector.load %arg7[%c1_59, %c0_60, %c0_61] : memref<2x4x64xf32, #tpu.memory_space<vmem>>, vector<1x4x64xf32>
      %92 = vector.shape_cast %91 : vector<1x4x64xf32> to vector<4x64xf32>
      %cst_62 = arith.constant dense<0.000000e+00> : vector<1x64xf32>
      %93 = tpu.matmul %90, %92, %cst_62 {dimension_numbers = #tpu.dot_dimension_numbers<[1], [0], [0], [1], [0, 0, 1, 1], [], []>} : vector<1x4xf32>, vector<4x64xf32>, vector<1x64xf32> -> vector<1x64xf32>
      %c1_63 = arith.constant 1 : index
      %c0_64 = arith.constant 0 : index
      %c0_65 = arith.constant 0 : index
      %94 = vector.load %arg8[%c1_63, %c0_64, %c0_65] : memref<2x1x64xf32, #tpu.memory_space<vmem>>, vector<1x1x64xf32>
      %95 = vector.shape_cast %94 : vector<1x1x64xf32> to vector<1x64xf32>
      %96 = arith.addf %93, %95 : vector<1x64xf32>
      %cst_66 = arith.constant 0.000000e+00 : f32
      %97 = vector.broadcast %cst_66 : f32 to vector<1x64xf32>
      %98 = arith.cmpf ogt, %96, %97 : vector<1x64xf32>
      %cst_67 = arith.constant 0.00999999977 : f32
      %99 = vector.broadcast %cst_67 : f32 to vector<1x64xf32>
      %100 = arith.mulf %99, %96 : vector<1x64xf32>
      %101 = arith.select %98, %96, %100 : vector<1x64xi1>, vector<1x64xf32>
      %102 = tpu.concatenate %101, %101 in 1 : vector<1x64xf32>, vector<1x64xf32> -> vector<1x128xf32>
      %103 = vector.shape_cast %102 : vector<1x128xf32> to vector<1x1x128xf32>
      %c0_68 = arith.constant 0 : index
      %c0_69 = arith.constant 0 : index
      %c0_70 = arith.constant 0 : index
      %104 = vector.load %arg9[%c0_68, %c0_69, %c0_70] : memref<1x1x128xf32, #tpu.memory_space<vmem>>, vector<1x1x128xf32>
      tpu.vector_store %arg9[%c0_68, %c0_69, %c0_70], %103 {strides = array<i32>} : memref<1x1x128xf32, #tpu.memory_space<vmem>>, vector<1x1x128xf32>,
    } else {
    }
    return
  }
  func.func @transform_0(%arg0: i32, %arg1: i32) -> (i32, i32, i32) {
    %c0_i32 = arith.constant 0 : i32
    %c0_i32_0 = arith.constant 0 : i32
    return %arg0, %arg1, %c0_i32 : i32, i32, i32
  }
  func.func @transform_1(%arg0: i32, %arg1: i32) -> (i32, i32, i32) {
    %c0_i32 = arith.constant 0 : i32
    %c0_i32_0 = arith.constant 0 : i32
    %c0_i32_1 = arith.constant 0 : i32
    %c0_i32_2 = arith.constant 0 : i32
    return %c0_i32, %c0_i32_0, %c0_i32_1 : i32, i32, i32
  }
  func.func @transform_2(%arg0: i32, %arg1: i32) -> (i32, i32, i32) {
    %c0_i32 = arith.constant 0 : i32
    %c0_i32_0 = arith.constant 0 : i32
    %c0_i32_1 = arith.constant 0 : i32
    %c0_i32_2 = arith.constant 0 : i32
    return %c0_i32, %c0_i32_0, %c0_i32_1 : i32, i32, i32
  }
  func.func @transform_3(%arg0: i32, %arg1: i32) -> (i32, i32, i32) {
    %c0_i32 = arith.constant 0 : i32
    %c0_i32_0 = arith.constant 0 : i32
    %c0_i32_1 = arith.constant 0 : i32
    %c0_i32_2 = arith.constant 0 : i32
    return %c0_i32, %c0_i32_0, %c0_i32_1 : i32, i32, i32
  }
  func.func @transform_4(%arg0: i32, %arg1: i32) -> (i32, i32, i32) {
    %c0_i32 = arith.constant 0 : i32
    %c0_i32_0 = arith.constant 0 : i32
    %c0_i32_1 = arith.constant 0 : i32
    %c0_i32_2 = arith.constant 0 : i32
    return %c0_i32, %c0_i32_0, %c0_i32_1 : i32, i32, i32
  }
  func.func @transform_5(%arg0: i32, %arg1: i32) -> (i32, i32, i32) {
    %c0_i32 = arith.constant 0 : i32
    %c0_i32_0 = arith.constant 0 : i32
    %c0_i32_1 = arith.constant 0 : i32
    %c0_i32_2 = arith.constant 0 : i32
    return %c0_i32, %c0_i32_0, %c0_i32_1 : i32, i32, i32
  }
  func.func @transform_6(%arg0: i32, %arg1: i32) -> (i32, i32, i32) {
    %c0_i32 = arith.constant 0 : i32
    %c0_i32_0 = arith.constant 0 : i32
    %c0_i32_1 = arith.constant 0 : i32
    %c0_i32_2 = arith.constant 0 : i32
    return %c0_i32, %c0_i32_0, %c0_i32_1 : i32, i32, i32
  }
  func.func @transform_7(%arg0: i32, %arg1: i32) -> (i32, i32, i32) {
    %c0_i32 = arith.constant 0 : i32
    %c0_i32_0 = arith.constant 0 : i32
    %c0_i32_1 = arith.constant 0 : i32
    return %arg0, %c0_i32, %c0_i32_0 : i32, i32, i32
  }
}

</mosaic_0001>

<llo_original>
// kernel: tpu_custom_call.1
$region0: #{tpu_custom_call.1}
  #allocation0 [shape = 'u32[]', space=smem, size = 0x4, offset = 0x4, fixed_abs, tag = 'smem constant byte address 0x4 - core index']
  #allocation1 [shape = 'u32[144,128]{1,0:T(1,128)}', space=vmem, size = 0x12000, scoped, tag = 'internal scratch']
  #allocation2 [shape = 'f32[1,128]{1,0:T(1,128)}', space=vmem, size = 0x200, scoped, tag = 'scratch operand']
  %s0 = inlined_call_operand.vmem [shape: f32[2,4,128], index: 0, kind: input, shape index: {}]
  %s1 = inlined_call_operand.vmem [shape: f32[2,64,4], index: 1, kind: input, shape index: {}]
  %s2 = inlined_call_operand.vmem [shape: f32[2,1,4], index: 2, kind: input, shape index: {}]
  %s3 = inlined_call_operand.vmem [shape: f32[2,1,4], index: 3, kind: input, shape index: {}]
  %s4 = inlined_call_operand.vmem [shape: f32[2,1,4], index: 4, kind: input, shape index: {}]
  %s5 = inlined_call_operand.vmem [shape: f32[2,4,64], index: 5, kind: input, shape index: {}]
  %s6 = inlined_call_operand.vmem [shape: f32[2,1,64], index: 6, kind: input, shape index: {}]
  %s7 = inlined_call_operand.hbm [shape: f32[2,1,128], index: 7, kind: output, shape index: {}]
  %s8 = sld [smem:[#allocation0]]
  $region69: #{tpu_custom_call.1} parent=0
    _
  %s10 = ssub.s32 1, %s8
  %s11 = scalar_select 0, %s10, %s8
  $region1: #{tpu_custom_call.1} parent=0
    #allocation3 [shape = 'u8[1024]{0}', space=vmem, size = 0x400, scoped, tag = 'output window, operand 0']
    #allocation4 [shape = 's32[2]{0}', space=sflag, size = 0x8, scoped, tag = 'scoped memory for tpu_custom_call.1']
    %12 = vsyncpa [#allocation4], 0
    %s13 = scalar_lea.sflag [#allocation4], 1
    %14 = vsyncpa %s13, 0
    loop: start=0, step=1, limit=4
    $region2: #{tpu_custom_call.1} parent=1 // loop_pre_header
      _
    $region3: #{tpu_custom_call.1} parent=1 // loop_header
      %s16 = sphi 0, %s20
      %p17 = scmp.ge.s32.totalorder %s16, 4
      %s23 = sphi 0, %s35
      %s24 = sphi 0, %s31
      %s25 = sphi 0, %s23
      %s26 = sphi 0, %s24
      %s27 = sphi 0, %s25
      %s28 = sphi 0, %s26
      %s40 = sphi 0, %s42
      %s43 = sphi 0, %s40
      %s44 = sphi 0, %s43
      %s60 = sphi 0, %s44
      %s64 = sphi 0, %s64
      %s66 = sphi 0, %s64
      %s67 = sphi 0, %s66
      %s81 = sphi 0, %s67
      %s85 = sphi 0, %s85
      %s87 = sphi 0, %s85
      %s88 = sphi 0, %s87
      %s102 = sphi 0, %s88
      %s106 = sphi 0, %s106
      %s108 = sphi 0, %s106
      %s109 = sphi 0, %s108
      %s123 = sphi 0, %s109
      %s127 = sphi 0, %s127
      %s129 = sphi 0, %s127
      %s130 = sphi 0, %s129
      %s144 = sphi 0, %s130
      %s148 = sphi 0, %s148
      %s150 = sphi 0, %s148
      %s151 = sphi 0, %s150
      %s165 = sphi 0, %s151
      %s169 = sphi 0, %s169
      %s171 = sphi 0, %s169
      %s172 = sphi 0, %s171
      %s186 = sphi 0, %s172
      %s192 = sphi 0, %s194
      %s195 = sphi 0, %s192
      %s196 = sphi 0, %s195
      %s212 = sphi 0, %s196
    $region4: #{tpu_custom_call.1} parent=1 // loop_header_branch
      %19 = sbr.rel (%p17) target = $region8
    $region5: #{tpu_custom_call.1} parent=1 // loop_body
      %s21 = ssub.s32 %s16, 1
      %s22 = ssub.s32 %s16, 2
      %s29 = sadd.s32 1, %s24
      %p30 = scmp.ge.s32.totalorder %s29, 1
      %s31 = scalar_select %p30, 0, %s29
      %s32 = sadd.s32 1, %s23
      %s33 = scalar_select %p30, %s32, %s23
      %p34 = scmp.ge.s32.totalorder %s33, 2
      %s35 = scalar_select %p34, 0, %s33
      %s36 = ssub.s32 %s23, %s35
      %s37 = ssub.s32 %s24, %s31
      %s38 = sor.u32 %s36, %s37
      %p39 = scmp.eq.s32.totalorder %s38, 0
      %s41 = sadd.s32 %s40, 1
      %s42 = scalar_select %p39, %s40, %s41
      %p45 = pneg %p39
      %p46 = scmp.eq.s32.totalorder %s16, 1
      %p47 = por %p45, %p46
      %p48 = scmp.ne.s32.totalorder %s40, %s43
      %p49 = scmp.eq.s32.totalorder %s16, 0
      %p50 = por %p48, %p49
      %p51 = scmp.ne.s32.totalorder %s40, %s43
      %p52 = scmp.eq.s32.totalorder %s21, 1
      %p53 = por %p51, %p52
      %p54 = scmp.ne.s32.totalorder %s43, %s44
      %p55 = scmp.eq.s32.totalorder %s21, 0
      %p56 = por %p54, %p55
      %p57 = scmp.ne.s32.totalorder %s43, %s44
      %p58 = scmp.eq.s32.totalorder %s22, 1
      %p59 = por %p57, %p58
      %p61 = scmp.ne.s32.totalorder %s44, %s60
      %p62 = scmp.eq.s32.totalorder %s22, 0
      %p63 = por %p61, %p62
      %s65 = sadd.s32 %s64, 1
      %p68 = scmp.eq.s32.totalorder %s16, 1
      %p69 = scmp.ne.s32.totalorder %s64, %s66
      %p70 = scmp.eq.s32.totalorder %s16, 0
      %p71 = por %p69, %p70
      %p72 = scmp.ne.s32.totalorder %s64, %s66
      %p73 = scmp.eq.s32.totalorder %s21, 1
      %p74 = por %p72, %p73
      %p75 = scmp.ne.s32.totalorder %s66, %s67
      %p76 = scmp.eq.s32.totalorder %s21, 0
      %p77 = por %p75, %p76
      %p78 = scmp.ne.s32.totalorder %s66, %s67
      %p79 = scmp.eq.s32.totalorder %s22, 1
      %p80 = por %p78, %p79
      %p82 = scmp.ne.s32.totalorder %s67, %s81
      %p83 = scmp.eq.s32.totalorder %s22, 0
      %p84 = por %p82, %p83
      %s86 = sadd.s32 %s85, 1
      %p89 = scmp.eq.s32.totalorder %s16, 1
      %p90 = scmp.ne.s32.totalorder %s85, %s87
      %p91 = scmp.eq.s32.totalorder %s16, 0
      %p92 = por %p90, %p91
      %p93 = scmp.ne.s32.totalorder %s85, %s87
      %p94 = scmp.eq.s32.totalorder %s21, 1
      %p95 = por %p93, %p94
      %p96 = scmp.ne.s32.totalorder %s87, %s88
      %p97 = scmp.eq.s32.totalorder %s21, 0
      %p98 = por %p96, %p97
      %p99 = scmp.ne.s32.totalorder %s87, %s88
      %p100 = scmp.eq.s32.totalorder %s22, 1
      %p101 = por %p99, %p100
      %p103 = scmp.ne.s32.totalorder %s88, %s102
      %p104 = scmp.eq.s32.totalorder %s22, 0
      %p105 = por %p103, %p104
      %s107 = sadd.s32 %s106, 1
      %p110 = scmp.eq.s32.totalorder %s16, 1
      %p111 = scmp.ne.s32.totalorder %s106, %s108
      %p112 = scmp.eq.s32.totalorder %s16, 0
      %p113 = por %p111, %p112
      %p114 = scmp.ne.s32.totalorder %s106, %s108
      %p115 = scmp.eq.s32.totalorder %s21, 1
      %p116 = por %p114, %p115
      %p117 = scmp.ne.s32.totalorder %s108, %s109
      %p118 = scmp.eq.s32.totalorder %s21, 0
      %p119 = por %p117, %p118
      %p120 = scmp.ne.s32.totalorder %s108, %s109
      %p121 = scmp.eq.s32.totalorder %s22, 1
      %p122 = por %p120, %p121
      %p124 = scmp.ne.s32.totalorder %s109, %s123
      %p125 = scmp.eq.s32.totalorder %s22, 0
      %p126 = por %p124, %p125
      %s128 = sadd.s32 %s127, 1
      %p131 = scmp.eq.s32.totalorder %s16, 1
      %p132 = scmp.ne.s32.totalorder %s127, %s129
      %p133 = scmp.eq.s32.totalorder %s16, 0
      %p134 = por %p132, %p133
      %p135 = scmp.ne.s32.totalorder %s127, %s129
      %p136 = scmp.eq.s32.totalorder %s21, 1
      %p137 = por %p135, %p136
      %p138 = scmp.ne.s32.totalorder %s129, %s130
      %p139 = scmp.eq.s32.totalorder %s21, 0
      %p140 = por %p138, %p139
      %p141 = scmp.ne.s32.totalorder %s129, %s130
      %p142 = scmp.eq.s32.totalorder %s22, 1
      %p143 = por %p141, %p142
      %p145 = scmp.ne.s32.totalorder %s130, %s144
      %p146 = scmp.eq.s32.totalorder %s22, 0
      %p147 = por %p145, %p146
      %s149 = sadd.s32 %s148, 1
      %p152 = scmp.eq.s32.totalorder %s16, 1
      %p153 = scmp.ne.s32.totalorder %s148, %s150
      %p154 = scmp.eq.s32.totalorder %s16, 0
      %p155 = por %p153, %p154
      %p156 = scmp.ne.s32.totalorder %s148, %s150
      %p157 = scmp.eq.s32.totalorder %s21, 1
      %p158 = por %p156, %p157
      %p159 = scmp.ne.s32.totalorder %s150, %s151
      %p160 = scmp.eq.s32.totalorder %s21, 0
      %p161 = por %p159, %p160
      %p162 = scmp.ne.s32.totalorder %s150, %s151
      %p163 = scmp.eq.s32.totalorder %s22, 1
      %p164 = por %p162, %p163
      %p166 = scmp.ne.s32.totalorder %s151, %s165
      %p167 = scmp.eq.s32.totalorder %s22, 0
      %p168 = por %p166, %p167
      %s170 = sadd.s32 %s169, 1
      %p173 = scmp.eq.s32.totalorder %s16, 1
      %p174 = scmp.ne.s32.totalorder %s169, %s171
      %p175 = scmp.eq.s32.totalorder %s16, 0
      %p176 = por %p174, %p175
      %p177 = scmp.ne.s32.totalorder %s169, %s171
      %p178 = scmp.eq.s32.totalorder %s21, 1
      %p179 = por %p177, %p178
      %p180 = scmp.ne.s32.totalorder %s171, %s172
      %p181 = scmp.eq.s32.totalorder %s21, 0
      %p182 = por %p180, %p181
      %p183 = scmp.ne.s32.totalorder %s171, %s172
      %p184 = scmp.eq.s32.totalorder %s22, 1
      %p185 = por %p183, %p184
      %p187 = scmp.ne.s32.totalorder %s172, %s186
      %p188 = scmp.eq.s32.totalorder %s22, 0
      %p189 = por %p187, %p188
      %s190 = ssub.s32 %s23, %s35
      %p191 = scmp.eq.s32.totalorder %s190, 0
      %s193 = sadd.s32 %s192, 1
      %s194 = scalar_select %p191, %s192, %s193
      %p197 = pneg %p191
      %p198 = scmp.eq.s32.totalorder %s16, 1
      %p199 = por %p197, %p198
      %p200 = scmp.ne.s32.totalorder %s192, %s195
      %p201 = scmp.eq.s32.totalorder %s16, 0
      %p202 = por %p200, %p201
      %p203 = scmp.ne.s32.totalorder %s192, %s195
      %p204 = scmp.eq.s32.totalorder %s21, 1
      %p205 = por %p203, %p204
      %p206 = scmp.ne.s32.totalorder %s195, %s196
      %p207 = scmp.eq.s32.totalorder %s21, 0
      %p208 = por %p206, %p207
      %p209 = scmp.ne.s32.totalorder %s195, %s196
      %p210 = scmp.eq.s32.totalorder %s22, 1
      %p211 = por %p209, %p210
      %p213 = scmp.ne.s32.totalorder %s196, %s212
      %p214 = scmp.eq.s32.totalorder %s22, 0
      %p215 = por %p213, %p214
      %p216 = scmp.le.s32.totalorder 1, %s16
      %p217 = scmp.lt.s32.totalorder %s16, 3
      %p218 = pnand %p216, %p217
      %p219 = pneg %p218
      // Predicated region
      $region9: #{tpu_custom_call.1} parent=5 // pred_check
        _
      $region10: #{tpu_custom_call.1} parent=5 // pred_check_branch
        %221 = sbr.rel (%p218) target = $region12
      $region11: #{tpu_custom_call.1} parent=5 // pred_region
        %s222 = ssub.s32 %s16, 1
        // Predicated region
        $region13: #{tpu_custom_call.1} parent=11 // pred_check
          %p223 = pneg %p77
        $region14: #{tpu_custom_call.1} parent=11 // pred_check_branch
          %225 = sbr.rel (%p223) target = $region16
        $region15: #{tpu_custom_call.1} parent=11 // pred_region
          _
        $region16: #{tpu_custom_call.1} parent=11 // pred_fallthru
          _
        // Predicated region
        $region17: #{tpu_custom_call.1} parent=11 // pred_check
          %p226 = pneg %p98
        $region18: #{tpu_custom_call.1} parent=11 // pred_check_branch
          %228 = sbr.rel (%p226) target = $region20
        $region19: #{tpu_custom_call.1} parent=11 // pred_region
          _
        $region20: #{tpu_custom_call.1} parent=11 // pred_fallthru
          _
        // Predicated region
        $region21: #{tpu_custom_call.1} parent=11 // pred_check
          %p229 = pneg %p119
        $region22: #{tpu_custom_call.1} parent=11 // pred_check_branch
          %231 = sbr.rel (%p229) target = $region24
        $region23: #{tpu_custom_call.1} parent=11 // pred_region
          _
        $region24: #{tpu_custom_call.1} parent=11 // pred_fallthru
          _
        // Predicated region
        $region25: #{tpu_custom_call.1} parent=11 // pred_check
          %p232 = pneg %p140
        $region26: #{tpu_custom_call.1} parent=11 // pred_check_branch
          %234 = sbr.rel (%p232) target = $region28
        $region27: #{tpu_custom_call.1} parent=11 // pred_region
          _
        $region28: #{tpu_custom_call.1} parent=11 // pred_fallthru
          _
        // Predicated region
        $region29: #{tpu_custom_call.1} parent=11 // pred_check
          %p235 = pneg %p161
        $region30: #{tpu_custom_call.1} parent=11 // pred_check_branch
          %237 = sbr.rel (%p235) target = $region32
        $region31: #{tpu_custom_call.1} parent=11 // pred_region
          _
        $region32: #{tpu_custom_call.1} parent=11 // pred_fallthru
          _
        // Predicated region
        $region33: #{tpu_custom_call.1} parent=11 // pred_check
          %p238 = pneg %p182
        $region34: #{tpu_custom_call.1} parent=11 // pred_check_branch
          %240 = sbr.rel (%p238) target = $region36
        $region35: #{tpu_custom_call.1} parent=11 // pred_region
          _
        $region36: #{tpu_custom_call.1} parent=11 // pred_fallthru
          _
      $region12: #{tpu_custom_call.1} parent=5 // pred_fallthru
        _
      %p241 = scmp.lt.s32.totalorder %s16, 2
      // Predicated region
      $region37: #{tpu_custom_call.1} parent=5 // pred_check
        %p242 = pneg %p241
      $region38: #{tpu_custom_call.1} parent=5 // pred_check_branch
        %244 = sbr.rel (%p242) target = $region40
      $region39: #{tpu_custom_call.1} parent=5 // pred_region
        // Predicated region
        $region41: #{tpu_custom_call.1} parent=39 // pred_check
          %p245 = pneg %p50
        $region42: #{tpu_custom_call.1} parent=39 // pred_check_branch
          %247 = sbr.rel (%p245) target = $region44
        $region43: #{tpu_custom_call.1} parent=39 // pred_region
          %p248 = scmp.lt.s32.totalorder %s23, 1
          %s249 = scalar_select %p248, %s23, 1
          %p250 = scmp.lt.s32.totalorder %s24, 0
          %s251 = scalar_select %p250, %s24, 0
          %s252 = sadd.s32 %s251, %s249
          %s253 = smul.addr %s252, 4
          %s254 = scalar_lea.vmem %s0, %s253
        $region44: #{tpu_custom_call.1} parent=39 // pred_fallthru
          _
      $region40: #{tpu_custom_call.1} parent=5 // pred_fallthru
        _
      %p255 = scmp.le.s32.totalorder 1, %s16
      %p256 = scmp.lt.s32.totalorder %s16, 3
      %p257 = pnand %p255, %p256
      %p258 = pneg %p257
      // Predicated region
      $region45: #{tpu_custom_call.1} parent=5 // pred_check
        _
      $region46: #{tpu_custom_call.1} parent=5 // pred_check_branch
        %260 = sbr.rel (%p257) target = $region48
      $region47: #{tpu_custom_call.1} parent=5 // pred_region
        %s261 = ssub.s32 %s16, 1
        %p262 = scmp.lt.s32.totalorder %s25, 1
        %s263 = scalar_select %p262, %s25, 1
        %p264 = scmp.lt.s32.totalorder %s26, 0
        %s265 = scalar_select %p264, %s26, 0
        %s266 = sadd.s32 %s265, %s263
        %s267 = smul.addr %s266, 4
        %s268 = scalar_lea.vmem %s0, %s267
        %p269 = pneg %p56
        %p270 = pneg %p53
        %p271 = pneg %p77
        %p272 = pneg %p74
        %p273 = pneg %p98
        %p274 = pneg %p95
        %p275 = pneg %p119
        %p276 = pneg %p116
        %p277 = pneg %p140
        %p278 = pneg %p137
        %p279 = pneg %p161
        %p280 = pneg %p158
        %p281 = pneg %p182
        %p282 = pneg %p179
        %p283 = pneg %p208
        %p284 = pneg %p205
        %s285 = sand.u32 %s195, 1
        %s286 = scalar_lea.sflag [#allocation4], %s285
        %s287 = sand.u32 %s195, 1
        %s288 = scalar_lea.vmem [#allocation3], %s287
        %p289 = scmp.lt.s32.totalorder %s25, 1
        %s290 = scalar_select %p289, %s25, 1
        %p291 = scmp.lt.s32.totalorder %s26, 0
        %s292 = scalar_select %p291, %s26, 0
        %s293 = sadd.s32 %s292, %s290
        %s294 = smul.addr %s293, 4
        %s295 = scalar_lea.vmem %s0, %s294
        %p296 = scmp.eq.s32.totalorder %s26, 0
        // Predicated region
        $region49: #{tpu_custom_call.1} parent=47 // pred_check
          %p297 = pneg %p296
        $region50: #{tpu_custom_call.1} parent=47 // pred_check_branch
          %299 = sbr.rel (%p297) target = $region52
        $region51: #{tpu_custom_call.1} parent=47 // pred_region
          %300 = vst [vmem:[#allocation2] sm:$0x1] 0.0
        $region52: #{tpu_custom_call.1} parent=47 // pred_fallthru
          _
        %v301 = vld [vmem:[%s295] sm:$0xf]
        %v302 = vld [vmem:[#allocation2] sm:$0x1]
        %vm303 = vcmask 1043456
        %v304 = vsel %vm303, %v301, 0.0
        %v305 = vrot.slane %v304, 4
        %v306 = vadd.f32 %v304, %v305
        %v307 = vrot.slane %v306, 2
        %v308 = vadd.f32 %v306, %v307
        %v309 = vrot.slane %v308, 1
        %v310 = vadd.f32 %v308, %v309
        %v311 = vadd.f32 %v302, %v310
        %312 = vst [vmem:[#allocation2] sm:$0x1] %v311
        // Predicated region
        $region53: #{tpu_custom_call.1} parent=47 // pred_check
          %p313 = pneg %p296
        $region54: #{tpu_custom_call.1} parent=47 // pred_check_branch
          %315 = sbr.rel (%p313) target = $region56
        $region55: #{tpu_custom_call.1} parent=47 // pred_region
          %v316 = vld [vmem:[#allocation2] sm:$0x1]
          %318 = vrot.lane.b32.xlu0 %v316, 64
          %v319 = vpop.permute.xlu0 %318
          %v321 = vadd.f32 %v316, %v319
          %v322 = vmul.f32 %v321, 0.125
          %v323 = vld [vmem:[%s1] sm:$0xff]
          %v324 = vld [vmem:[%s1 + $0x8] sm:$0xff]
          %v325 = vld [vmem:[%s1 + $0x10] sm:$0xff]
          %v326 = vld [vmem:[%s1 + $0x18] sm:$0xff]
          %v327 = vld [vmem:[%s1 + $0x20] sm:$0xff]
          %v328 = vld [vmem:[%s1 + $0x28] sm:$0xff]
          %v329 = vld [vmem:[%s1 + $0x30] sm:$0xff]
          %v330 = vld [vmem:[%s1 + $0x38] sm:$0xff]
          %v331 = vld [vmem:[%s2] sm:$0x1]
          %vm332 = vcmask 523264
          %v334 = vsel %vm332, %v322, 0
          %336 = vmatprep.subr.mxu0 0.0
          %337 = vmatpush1.msra.mxu0 %v323
          %338 = vmatprep.subr.mxu0 0.0
          %339 = vmatpush1.msra.mxu0 %v324
          %340 = vmatprep.subr.mxu0 0.0
          %341 = vmatpush1.msra.mxu0 %v325
          %342 = vmatprep.subr.mxu0 0.0
          %343 = vmatpush1.msra.mxu0 %v326
          %344 = vmatprep.subr.mxu0 0.0
          %345 = vmatpush1.msra.mxu0 %v327
          %346 = vmatprep.subr.mxu0 0.0
          %347 = vmatpush1.msra.mxu0 %v328
          %348 = vmatprep.subr.mxu0 0.0
          %349 = vmatpush1.msra.mxu0 %v329
          %350 = vmatprep.subr.mxu0 0.0
          %351 = vmatpush1.msra.mxu0 %v330
          %352 = vmatprep.subr.mxu0 0.0
          %353 = vmatpush1.msra.mxu0 0.0
          %354 = vmatprep.subr.mxu0 0.0
          %355 = vmatpush1.msra.mxu0 0.0
          %356 = vmatprep.subr.mxu0 0.0
          %357 = vmatpush1.msra.mxu0 0.0
          %358 = vmatprep.subr.mxu0 0.0
          %359 = vmatpush1.msra.mxu0 0.0
          %360 = vmatprep.subr.mxu0 0.0
          %361 = vmatpush1.msra.mxu0 0.0
          %362 = vmatprep.subr.mxu0 0.0
          %363 = vmatpush1.msra.mxu0 0.0
          %364 = vmatprep.subr.mxu0 0.0
          %365 = vmatpush1.msra.mxu0 0.0
          %366 = vmatprep.subr.mxu0 0.0
          %367 = vmatpush1.msra.mxu0 0.0
          %368 = vmatprep.subr.mxu0 0.0
          %369 = vmatpush1.msra.mxu0 0.0
          %370 = vmatprep.subr.mxu0 0.0
          %371 = vmatpush1.msra.mxu0 0.0
          %372 = vmatprep.subr.mxu0 0.0
          %373 = vmatpush1.msra.mxu0 0.0
          %374 = vmatprep.subr.mxu0 0.0
          %375 = vmatpush1.msra.mxu0 0.0
          %376 = vmatprep.subr.mxu0 0.0
          %377 = vmatpush1.msra.mxu0 0.0
          %378 = vmatprep.subr.mxu0 0.0
          %379 = vmatpush1.msra.mxu0 0.0
          %380 = vmatprep.subr.mxu0 0.0
          %381 = vmatpush1.msra.mxu0 0.0
          %382 = vmatprep.subr.mxu0 0.0
          %383 = vmatpush1.msra.mxu0 0.0
          %384 = vmatprep.subr.mxu0 0.0
          %385 = vmatpush1.msra.mxu0 0.0
          %386 = vmatprep.subr.mxu0 0.0
          %387 = vmatpush1.msra.mxu0 0.0
          %388 = vmatprep.subr.mxu0 0.0
          %389 = vmatpush1.msra.mxu0 0.0
          %390 = vmatprep.subr.mxu0 0.0
          %391 = vmatpush1.msra.mxu0 0.0
          %392 = vmatprep.subr.mxu0 0.0
          %393 = vmatpush1.msra.mxu0 0.0
          %394 = vmatprep.subr.mxu0 0.0
          %395 = vmatpush1.msra.mxu0 0.0
          %396 = vmatprep.subr.mxu0 0.0
          %397 = vmatpush1.msra.mxu0 0.0
          %398 = vmatprep.subr.mxu0 0.0
          %399 = vmatpush1.msra.mxu0 0.0
          %400 = vmatprep.mubr.f32.mxu0 0.0
          %401 = vmatmul.mubr.f32.gmra.mrb[0].mxu0 %v334
          %v402 = vpop.f32.mrb[0].mxu0
          %v403 = vadd.f32 %v331, %v402
          %v404 = vpop.f32.mrb[0].mxu0
          %405 = vdwg.mxu0
          %vm406 = vcmask 24576
          %v407 = vsel %vm406, %v403, 0.0
          %408 = vadd.xlane.f32.xlu0 %v407
          %v409 = vpop.xlane.xlu0 %408
          %v410 = vrcp.pop 4.0
          %v411 = vmul.f32 %v409, %v410
          %v412 = vsub.f32 %v403, %v411
          %v413 = vmul.f32 %v412, %v412
          %v414 = vsel %vm406, %v413, 0.0
          %415 = vadd.xlane.f32.xlu0 %v414
          %v416 = vpop.xlane.xlu0 %415
          %v417 = vmul.f32 %v416, %v410
          %v418 = vadd.f32 %v417, 1e-05
          %v419 = vrsqrt.pop %v418
          %v420 = vmul.f32 %v412, %v419
          %v421 = vld [vmem:[%s3] sm:$0x1]
          %v422 = vmul.f32 %v420, %v421
          %v423 = vld [vmem:[%s4] sm:$0x1]
          %v424 = vadd.f32 %v422, %v423
          %v425 = vmax.f32 %v424, 0.0
          %v426 = vld [vmem:[%s5] sm:$0xf]
          %v427 = vld [vmem:[%s6] sm:$0x1]
          %vm428 = vcmask 31744
          %v430 = vsel %vm428, %v425, 0
          %v433 = vsel %vm303, %v426, 0
          %435 = vmatprep.subr.mxu0 0.0
          %436 = vmatpush1.msra.mxu0 %v433
          %437 = vmatprep.subr.mxu0 0.0
          %438 = vmatpush1.msra.mxu0 0.0
          %439 = vmatprep.subr.mxu0 0.0
          %440 = vmatpush1.msra.mxu0 0.0
          %441 = vmatprep.subr.mxu0 0.0
          %442 = vmatpush1.msra.mxu0 0.0
          %443 = vmatprep.subr.mxu0 0.0
          %444 = vmatpush1.msra.mxu0 0.0
          %445 = vmatprep.subr.mxu0 0.0
          %446 = vmatpush1.msra.mxu0 0.0
          %447 = vmatprep.subr.mxu0 0.0
          %448 = vmatpush1.msra.mxu0 0.0
          %449 = vmatprep.subr.mxu0 0.0
          %450 = vmatpush1.msra.mxu0 0.0
          %451 = vmatprep.subr.mxu0 0.0
          %452 = vmatpush1.msra.mxu0 0.0
          %453 = vmatprep.subr.mxu0 0.0
          %454 = vmatpush1.msra.mxu0 0.0
          %455 = vmatprep.subr.mxu0 0.0
          %456 = vmatpush1.msra.mxu0 0.0
          %457 = vmatprep.subr.mxu0 0.0
          %458 = vmatpush1.msra.mxu0 0.0
          %459 = vmatprep.subr.mxu0 0.0
          %460 = vmatpush1.msra.mxu0 0.0
          %461 = vmatprep.subr.mxu0 0.0
          %462 = vmatpush1.msra.mxu0 0.0
          %463 = vmatprep.subr.mxu0 0.0
          %464 = vmatpush1.msra.mxu0 0.0
          %465 = vmatprep.subr.mxu0 0.0
          %466 = vmatpush1.msra.mxu0 0.0
          %467 = vmatprep.subr.mxu0 0.0
          %468 = vmatpush1.msra.mxu0 0.0
          %469 = vmatprep.subr.mxu0 0.0
          %470 = vmatpush1.msra.mxu0 0.0
          %471 = vmatprep.subr.mxu0 0.0
          %472 = vmatpush1.msra.mxu0 0.0
          %473 = vmatprep.subr.mxu0 0.0
          %474 = vmatpush1.msra.mxu0 0.0
          %475 = vmatprep.subr.mxu0 0.0
          %476 = vmatpush1.msra.mxu0 0.0
          %477 = vmatprep.subr.mxu0 0.0
          %478 = vmatpush1.msra.mxu0 0.0
          %479 = vmatprep.subr.mxu0 0.0
          %480 = vmatpush1.msra.mxu0 0.0
          %481 = vmatprep.subr.mxu0 0.0
          %482 = vmatpush1.msra.mxu0 0.0
          %483 = vmatprep.subr.mxu0 0.0
          %484 = vmatpush1.msra.mxu0 0.0
          %485 = vmatprep.subr.mxu0 0.0
          %486 = vmatpush1.msra.mxu0 0.0
          %487 = vmatprep.subr.mxu0 0.0
          %488 = vmatpush1.msra.mxu0 0.0
          %489 = vmatprep.subr.mxu0 0.0
          %490 = vmatpush1.msra.mxu0 0.0
          %491 = vmatprep.subr.mxu0 0.0
          %492 = vmatpush1.msra.mxu0 0.0
          %493 = vmatprep.subr.mxu0 0.0
          %494 = vmatpush1.msra.mxu0 0.0
          %495 = vmatprep.subr.mxu0 0.0
          %496 = vmatpush1.msra.mxu0 0.0
          %497 = vmatprep.subr.mxu0 0.0
          %498 = vmatpush1.msra.mxu0 0.0
          %499 = vmatprep.mubr.f32.mxu0 0.0
          %500 = vmatmul.mubr.f32.gmra.mrb[0].mxu0 %v430
          %v501 = vpop.f32.mrb[0].mxu0
          %v502 = vadd.f32 %v427, %v501
          %v503 = vpop.f32.mrb[0].mxu0
          %504 = vdwg.mxu0
          %vm505 = vcmp.gt.f32.partialorder %v502, 0.0
          %v506 = vmul.f32 %v502, 0.01
          %v507 = vsel %vm505, %v502, %v506
          %s508 = scalar_lea.vmem %s1, 64
          %v509 = vld [vmem:[%s508] sm:$0xff]
          %v510 = vld [vmem:[%s508 + $0x8] sm:$0xff]
          %v511 = vld [vmem:[%s508 + $0x10] sm:$0xff]
          %v512 = vld [vmem:[%s508 + $0x18] sm:$0xff]
          %v513 = vld [vmem:[%s508 + $0x20] sm:$0xff]
          %v514 = vld [vmem:[%s508 + $0x28] sm:$0xff]
          %v515 = vld [vmem:[%s508 + $0x30] sm:$0xff]
          %v516 = vld [vmem:[%s508 + $0x38] sm:$0xff]
          %s517 = scalar_lea.vmem %s2, 1
          %v518 = vld [vmem:[%s517] sm:$0x1]
          %v520 = vsel %vm332, %v507, 0
          %522 = vmatprep.subr.mxu0 0.0
          %523 = vmatpush1.msra.mxu0 %v509
          %524 = vmatprep.subr.mxu0 0.0
          %525 = vmatpush1.msra.mxu0 %v510
          %526 = vmatprep.subr.mxu0 0.0
          %527 = vmatpush1.msra.mxu0 %v511
          %528 = vmatprep.subr.mxu0 0.0
          %529 = vmatpush1.msra.mxu0 %v512
          %530 = vmatprep.subr.mxu0 0.0
          %531 = vmatpush1.msra.mxu0 %v513
          %532 = vmatprep.subr.mxu0 0.0
          %533 = vmatpush1.msra.mxu0 %v514
          %534 = vmatprep.subr.mxu0 0.0
          %535 = vmatpush1.msra.mxu0 %v515
          %536 = vmatprep.subr.mxu0 0.0
          %537 = vmatpush1.msra.mxu0 %v516
          %538 = vmatprep.subr.mxu0 0.0
          %539 = vmatpush1.msra.mxu0 0.0
          %540 = vmatprep.subr.mxu0 0.0
          %541 = vmatpush1.msra.mxu0 0.0
          %542 = vmatprep.subr.mxu0 0.0
          %543 = vmatpush1.msra.mxu0 0.0
          %544 = vmatprep.subr.mxu0 0.0
          %545 = vmatpush1.msra.mxu0 0.0
          %546 = vmatprep.subr.mxu0 0.0
          %547 = vmatpush1.msra.mxu0 0.0
          %548 = vmatprep.subr.mxu0 0.0
          %549 = vmatpush1.msra.mxu0 0.0
          %550 = vmatprep.subr.mxu0 0.0
          %551 = vmatpush1.msra.mxu0 0.0
          %552 = vmatprep.subr.mxu0 0.0
          %553 = vmatpush1.msra.mxu0 0.0
          %554 = vmatprep.subr.mxu0 0.0
          %555 = vmatpush1.msra.mxu0 0.0
          %556 = vmatprep.subr.mxu0 0.0
          %557 = vmatpush1.msra.mxu0 0.0
          %558 = vmatprep.subr.mxu0 0.0
          %559 = vmatpush1.msra.mxu0 0.0
          %560 = vmatprep.subr.mxu0 0.0
          %561 = vmatpush1.msra.mxu0 0.0
          %562 = vmatprep.subr.mxu0 0.0
          %563 = vmatpush1.msra.mxu0 0.0
          %564 = vmatprep.subr.mxu0 0.0
          %565 = vmatpush1.msra.mxu0 0.0
          %566 = vmatprep.subr.mxu0 0.0
          %567 = vmatpush1.msra.mxu0 0.0
          %568 = vmatprep.subr.mxu0 0.0
          %569 = vmatpush1.msra.mxu0 0.0
          %570 = vmatprep.subr.mxu0 0.0
          %571 = vmatpush1.msra.mxu0 0.0
          %572 = vmatprep.subr.mxu0 0.0
          %573 = vmatpush1.msra.mxu0 0.0
          %574 = vmatprep.subr.mxu0 0.0
          %575 = vmatpush1.msra.mxu0 0.0
          %576 = vmatprep.subr.mxu0 0.0
          %577 = vmatpush1.msra.mxu0 0.0
          %578 = vmatprep.subr.mxu0 0.0
          %579 = vmatpush1.msra.mxu0 0.0
          %580 = vmatprep.subr.mxu0 0.0
          %581 = vmatpush1.msra.mxu0 0.0
          %582 = vmatprep.subr.mxu0 0.0
          %583 = vmatpush1.msra.mxu0 0.0
          %584 = vmatprep.subr.mxu0 0.0
          %585 = vmatpush1.msra.mxu0 0.0
          %586 = vmatprep.mubr.f32.mxu0 0.0
          %587 = vmatmul.mubr.f32.gmra.mrb[0].mxu0 %v520
          %v588 = vpop.f32.mrb[0].mxu0
          %v589 = vadd.f32 %v518, %v588
          %v590 = vpop.f32.mrb[0].mxu0
          %591 = vdwg.mxu0
          %v592 = vsel %vm406, %v589, 0.0
          %593 = vadd.xlane.f32.xlu0 %v592
          %v594 = vpop.xlane.xlu0 %593
          %v595 = vmul.f32 %v594, %v410
          %v596 = vsub.f32 %v589, %v595
          %v597 = vmul.f32 %v596, %v596
          %v598 = vsel %vm406, %v597, 0.0
          %599 = vadd.xlane.f32.xlu0 %v598
          %v600 = vpop.xlane.xlu0 %599
          %v601 = vmul.f32 %v600, %v410
          %v602 = vadd.f32 %v601, 1e-05
          %v603 = vrsqrt.pop %v602
          %v604 = vmul.f32 %v596, %v603
          %s605 = scalar_lea.vmem %s3, 1
          %v606 = vld [vmem:[%s605] sm:$0x1]
          %v607 = vmul.f32 %v604, %v606
          %s608 = scalar_lea.vmem %s4, 1
          %v609 = vld [vmem:[%s608] sm:$0x1]
          %v610 = vadd.f32 %v607, %v609
          %v611 = vmax.f32 %v610, 0.0
          %s612 = scalar_lea.vmem %s5, 4
          %v613 = vld [vmem:[%s612] sm:$0xf]
          %s614 = scalar_lea.vmem %s6, 1
          %v615 = vld [vmem:[%s614] sm:$0x1]
          %v617 = vsel %vm428, %v611, 0
          %v620 = vsel %vm303, %v613, 0
          %622 = vmatprep.subr.mxu0 0.0
          %623 = vmatpush1.msra.mxu0 %v620
          %624 = vmatprep.subr.mxu0 0.0
          %625 = vmatpush1.msra.mxu0 0.0
          %626 = vmatprep.subr.mxu0 0.0
          %627 = vmatpush1.msra.mxu0 0.0
          %628 = vmatprep.subr.mxu0 0.0
          %629 = vmatpush1.msra.mxu0 0.0
          %630 = vmatprep.subr.mxu0 0.0
          %631 = vmatpush1.msra.mxu0 0.0
          %632 = vmatprep.subr.mxu0 0.0
          %633 = vmatpush1.msra.mxu0 0.0
          %634 = vmatprep.subr.mxu0 0.0
          %635 = vmatpush1.msra.mxu0 0.0
          %636 = vmatprep.subr.mxu0 0.0
          %637 = vmatpush1.msra.mxu0 0.0
          %638 = vmatprep.subr.mxu0 0.0
          %639 = vmatpush1.msra.mxu0 0.0
          %640 = vmatprep.subr.mxu0 0.0
          %641 = vmatpush1.msra.mxu0 0.0
          %642 = vmatprep.subr.mxu0 0.0
          %643 = vmatpush1.msra.mxu0 0.0
          %644 = vmatprep.subr.mxu0 0.0
          %645 = vmatpush1.msra.mxu0 0.0
          %646 = vmatprep.subr.mxu0 0.0
          %647 = vmatpush1.msra.mxu0 0.0
          %648 = vmatprep.subr.mxu0 0.0
          %649 = vmatpush1.msra.mxu0 0.0
          %650 = vmatprep.subr.mxu0 0.0
          %651 = vmatpush1.msra.mxu0 0.0
          %652 = vmatprep.subr.mxu0 0.0
          %653 = vmatpush1.msra.mxu0 0.0
          %654 = vmatprep.subr.mxu0 0.0
          %655 = vmatpush1.msra.mxu0 0.0
          %656 = vmatprep.subr.mxu0 0.0
          %657 = vmatpush1.msra.mxu0 0.0
          %658 = vmatprep.subr.mxu0 0.0
          %659 = vmatpush1.msra.mxu0 0.0
          %660 = vmatprep.subr.mxu0 0.0
          %661 = vmatpush1.msra.mxu0 0.0
          %662 = vmatprep.subr.mxu0 0.0
          %663 = vmatpush1.msra.mxu0 0.0
          %664 = vmatprep.subr.mxu0 0.0
          %665 = vmatpush1.msra.mxu0 0.0
          %666 = vmatprep.subr.mxu0 0.0
          %667 = vmatpush1.msra.mxu0 0.0
          %668 = vmatprep.subr.mxu0 0.0
          %669 = vmatpush1.msra.mxu0 0.0
          %670 = vmatprep.subr.mxu0 0.0
          %671 = vmatpush1.msra.mxu0 0.0
          %672 = vmatprep.subr.mxu0 0.0
          %673 = vmatpush1.msra.mxu0 0.0
          %674 = vmatprep.subr.mxu0 0.0
          %675 = vmatpush1.msra.mxu0 0.0
          %676 = vmatprep.subr.mxu0 0.0
          %677 = vmatpush1.msra.mxu0 0.0
          %678 = vmatprep.subr.mxu0 0.0
          %679 = vmatpush1.msra.mxu0 0.0
          %680 = vmatprep.subr.mxu0 0.0
          %681 = vmatpush1.msra.mxu0 0.0
          %682 = vmatprep.subr.mxu0 0.0
          %683 = vmatpush1.msra.mxu0 0.0
          %684 = vmatprep.subr.mxu0 0.0
          %685 = vmatpush1.msra.mxu0 0.0
          %686 = vmatprep.mubr.f32.mxu0 0.0
          %687 = vmatmul.mubr.f32.gmra.mrb[0].mxu0 %v617
          %v688 = vpop.f32.mrb[0].mxu0
          %v689 = vadd.f32 %v615, %v688
          %v690 = vpop.f32.mrb[0].mxu0
          %691 = vdwg.mxu0
          %vm692 = vcmp.gt.f32.partialorder %v689, 0.0
          %v693 = vmul.f32 %v689, 0.01
          %v694 = vsel %vm692, %v689, %v693
          %696 = vrot.lane.b32.xlu0 %v694, 64
          %v697 = vpop.permute.xlu0 %696
          %v699 = vsel %vm332, %v694, %v697
          %700 = vst [vmem:[%s288] sm:$0x1] %v699
        $region56: #{tpu_custom_call.1} parent=47 // pred_fallthru
          _
        %s701 = sand.u32 %s195, 1
        %s702 = scalar_lea.sflag [#allocation4], %s701
        %s703 = sand.u32 %s195, 1
        %s704 = scalar_lea.vmem [#allocation3], %s703
        // Predicated region
        $region57: #{tpu_custom_call.1} parent=47 // pred_check
          %p705 = pneg %p205
        $region58: #{tpu_custom_call.1} parent=47 // pred_check_branch
          %707 = sbr.rel (%p705) target = $region60
        $region59: #{tpu_custom_call.1} parent=47 // pred_region
          %s709 = ssub.s32 16, 16
          %710 = vsyncadd %s702, %s709
          %s711 = smul.addr %s25, 16
          %s712 = scalar_lea.hbm %s7, %s711
          %s714 = sshll.u32 %s704, 4
          %s715 = int_to_ptr.vmem [resolvable:$true] %s714
          %717 = dma.vmem_to_hbm [thread:$0]  %s715, 16, %s712, %s702
        $region60: #{tpu_custom_call.1} parent=47 // pred_fallthru
          _
      $region48: #{tpu_custom_call.1} parent=5 // pred_fallthru
        _
      %p718 = scmp.le.s32.totalorder 2, %s16
      // Predicated region
      $region61: #{tpu_custom_call.1} parent=5 // pred_check
        %p719 = pneg %p718
      $region62: #{tpu_custom_call.1} parent=5 // pred_check_branch
        %721 = sbr.rel (%p719) target = $region64
      $region63: #{tpu_custom_call.1} parent=5 // pred_region
        %s722 = ssub.s32 %s16, 2
        // Predicated region
        $region65: #{tpu_custom_call.1} parent=63 // pred_check
          %p723 = pneg %p211
        $region66: #{tpu_custom_call.1} parent=63 // pred_check_branch
          %725 = sbr.rel (%p723) target = $region68
        $region67: #{tpu_custom_call.1} parent=63 // pred_region
          %s726 = sand.u32 %s196, 1
          %s727 = scalar_lea.sflag [#allocation4], %s726
          %s728 = sand.u32 %s196, 1
          %s729 = scalar_lea.vmem [#allocation3], %s728
          %730 = dma.done %s727, 16
        $region68: #{tpu_custom_call.1} parent=63 // pred_fallthru
          _
      $region64: #{tpu_custom_call.1} parent=5 // pred_fallthru
        _
    $region6: #{tpu_custom_call.1} parent=1 // loop_footer
      %s20 = sadd.s32 1, %s16
    $region7: #{tpu_custom_call.1} parent=1 // loop_footer_branch
      %15 = sbr.rel target = $region3
    $region8: #{tpu_custom_call.1} parent=1 // loop_exit
      _
    %731 = vsyncpa [#allocation4], 1
    %s732 = scalar_lea.sflag [#allocation4], 1
    %733 = vsyncpa %s732, 1

</llo_original>
